<compile_context>
chip_gen: v7x
topology: tpu7x:2x2x1
jax: 0.10.0
libtpu: 0.0.40
codegen_flags: <defaults>
</compile_context>

<pallas_src>
import functools

import jax
import jax.numpy as jnp
from jax.experimental import pallas as pl
from jax.experimental.pallas import tpu as pltpu


def _round_up(x, m):
    return ((x + m - 1) // m) * m


def _dgauss_kernel(h_ref, w_ref, b_ref, loc_ref, logscale_ref):
    """One (bb, Cin, TS) tile: fused 1x1-conv heads via exact-f32 VPU FMAs.

    h_ref:        (bb, Cin, TS)   input features (spatial on the lane axis)
    w_ref:        (2*Cout, Cin)   fused [loc; logscale] 1x1-conv weights
    b_ref:        (2*Cout, 1)     fused biases
    loc_ref:      (bb, Cout, TS)
    logscale_ref: (bb, Cout, TS)  (clamped at min=-9)
    """
    bb, cin, ts = h_ref.shape
    cout = loc_ref.shape[1]
    c2 = 2 * cout
    w = w_ref[...]                    # (2*Cout, Cin): tiny, vreg-resident
    bias = b_ref[...]                 # (2*Cout, 1)
    for b in range(bb):               # static unroll over the small batch block
        acc = jnp.broadcast_to(bias, (c2, ts))
        # Exact-f32 broadcast-FMA over the 1x1-conv contraction dim.  Cin is
        # small for a decoder head; kernel stays HBM-bound.  (For very large
        # latent_dim an MXU jnp.dot would be preferable instead.)
        for c in range(cin):
            acc = acc + w[:, c:c + 1] * h_ref[b, c:c + 1, :]
        loc_ref[b] = acc[:cout].astype(loc_ref.dtype)
        logscale_ref[b] = jnp.maximum(acc[cout:], -9.0).astype(logscale_ref.dtype)


def dgauss_forward(h_nchw, w_loc, b_loc, w_ls, b_ls, *, tile_s=16384,
                   vmem_data_budget=24 * 1024 * 1024, max_batch_unroll=32):
    """Forward of DGaussNet: (conv1x1_loc(h), conv1x1_logscale(h).clamp(min=-9)).

    Args:
      h_nchw: (B, Cin, H, W) float32 (PyTorch NCHW).
      w_loc, w_ls: (Cout, Cin) float32 (PyTorch (Cout, Cin, 1, 1) squeezed).
      b_loc, b_ls: (Cout,) float32.
      tile_s: target spatial tile width in lanes (>=8192 recommended on
        v5e/v6e, ~16384-32768 on v7x); auto-shrunk to the map / VMEM budget.
    Returns:
      (loc, logscale), both (B, Cout, H, W) float32.
    """
    B, Cin, H, W = h_nchw.shape
    Cout = w_loc.shape[0]
    HW = H * W
    HW_blocks = pl.cdiv(HW, 128)
    target_blocks = pl.cdiv(max(int(tile_s), 128), 128)

    # Double-buffered VMEM bytes per batch row per 128-lane spatial block
    # (one input tile + two output tiles, sublane-padded to 8).
    per_b_per_block = 4 * 128 * (2 * _round_up(Cin, 8) + 4 * _round_up(Cout, 8))

    # Fold batch into the block only when the spatial map alone cannot fill the
    # lane target (amortizes the ~0.35 us per-grid-step overhead).
    if HW_blocks >= target_blocks:
        bb = 1
    else:
        bb = min(B, pl.cdiv(target_blocks, HW_blocks), max_batch_unroll)
        bb = max(1, min(bb, vmem_data_budget // (per_b_per_block * HW_blocks)))
    n_b = pl.cdiv(B, bb)

    # Spatial tile: hit the lane target, stay inside the VMEM budget, and
    # re-balance so the last tile is not tiny.
    max_blocks_vmem = max(1, vmem_data_budget // (per_b_per_block * bb))
    ts_blocks = max(1, min(target_blocks, HW_blocks, max_blocks_vmem))
    n_s = pl.cdiv(HW_blocks, ts_blocks)
    ts_blocks = pl.cdiv(HW_blocks, n_s)
    # Keep both v7x TensorCores busy when a single step would cover a big map.
    if n_b * n_s == 1 and HW_blocks >= 64:
        n_s = 2
        ts_blocks = pl.cdiv(HW_blocks, n_s)
    # Single-tile: block == full map (no OOB lanes at all).  Multi-tile:
    # 128-lane-aligned tiles; a ragged last tile is a partial edge block that
    # Pallas handles (no wrapper-side pad / slice HBM passes).
    ts = HW if n_s == 1 else 128 * ts_blocks

    # (B, Cin, H, W) -> (B, Cin, H*W): layout-preserving, no data movement.
    h3 = h_nchw.reshape(B, Cin, HW)
    # Fuse the two heads into one weight / bias (tiny arrays).
    w_all = jnp.concatenate([w_loc, w_ls], axis=0)                 # (2*Cout, Cin)
    b_all = jnp.concatenate([b_loc, b_ls], axis=0).reshape(2 * Cout, 1)

    grid = (n_b, n_s)
    h_spec = pl.BlockSpec((bb, Cin, ts), lambda bi, si: (bi, 0, si))
    w_spec = pl.BlockSpec((2 * Cout, Cin), lambda bi, si: (0, 0))  # VMEM-resident
    b_spec = pl.BlockSpec((2 * Cout, 1), lambda bi, si: (0, 0))    # VMEM-resident
    out_spec = pl.BlockSpec((bb, Cout, ts), lambda bi, si: (bi, 0, si))

    loc3, ls3 = pl.pallas_call(
        _dgauss_kernel,
        out_shape=(jax.ShapeDtypeStruct((B, Cout, HW), jnp.float32),
                   jax.ShapeDtypeStruct((B, Cout, HW), jnp.float32)),
        grid_spec=pltpu.PrefetchScalarGridSpec(
            num_scalar_prefetch=0,
            grid=grid,
            in_specs=[h_spec, w_spec, b_spec],
            out_specs=[out_spec, out_spec],
        ),
        compiler_params=pltpu.CompilerParams(
            dimension_semantics=("parallel", "parallel"),
            # Above v5e's 16 MiB default scoped limit, below v7x's 64 MiB VMEM.
            vmem_limit_bytes=48 * 1024 * 1024,
        ),
    )(h3, w_all, b_all)

    return loc3.reshape(B, Cout, H, W), ls3.reshape(B, Cout, H, W)


def init_dgauss_params(key, latent_dim, input_channels, fixed_logvar='False'):
    """Synthetic params matching nn.Conv2d(latent_dim, input_channels, 1)."""
    k1, k2, k3, k4 = jax.random.split(key, 4)
    bound = 1.0 / jnp.sqrt(jnp.float32(latent_dim))
    w_loc = jax.random.uniform(k1, (input_channels, latent_dim), jnp.float32,
                               -bound, bound)
    b_loc = jax.random.uniform(k2, (input_channels,), jnp.float32, -bound, bound)
    if fixed_logvar != 'False':
        w_ls = jnp.zeros((input_channels, latent_dim), jnp.float32)
        b_ls = jnp.full((input_channels,), jnp.float32(fixed_logvar))
    else:
        w_ls = jax.random.uniform(k3, (input_channels, latent_dim), jnp.float32,
                                  -bound, bound)
        b_ls = jax.random.uniform(k4, (input_channels,), jnp.float32,
                                  -bound, bound)
    return w_loc, b_loc, w_ls, b_ls


def _reference_forward(h_nchw, w_loc, b_loc, w_ls, b_ls):
    # Exact-f32 elementwise reference of the PyTorch forward (no dot, so no
    # TPU matmul-precision ambiguity in the comparison).
    def conv1x1(w, b):
        y = jnp.sum(h_nchw[:, None] * w[None, :, :, None, None], axis=2)
        return y + b[None, :, None, None]
    loc = conv1x1(w_loc, b_loc)
    logscale = jnp.maximum(conv1x1(w_ls, b_ls), -9.0)
    return loc, logscale


def _check(h, params, tile_s=16384):
    B, _, H, W = h.shape
    Cout = params[0].shape[0]
    fwd = jax.jit(functools.partial(dgauss_forward, tile_s=tile_s))
    loc, logscale = fwd(h, *params)
    jax.block_until_ready((loc, logscale))
    ref_loc, ref_ls = _reference_forward(h, *params)
    assert loc.shape == (B, Cout, H, W)
    assert logscale.shape == (B, Cout, H, W)
    assert jnp.allclose(loc, ref_loc, atol=1e-5, rtol=1e-5)
    assert jnp.allclose(logscale, ref_ls, atol=1e-5, rtol=1e-5)


if __name__ == "__main__":
    key = jax.random.PRNGKey(0)
    k_h1, k_h2, k_h3, k_p = jax.random.split(key, 4)

    B, latent_dim, input_channels = 2, 8, 3
    params = init_dgauss_params(k_p, latent_dim, input_channels,
                                fixed_logvar='False')

    # Aligned spatial size (16x16 = 256 lanes): single tile, batch folded.
    h1 = jax.random.normal(k_h1, (B, latent_dim, 16, 16), jnp.float32)
    _check(h1, params)

    # Ragged spatial size (15x15 = 225 lanes): single full-map tile, no pad.
    h2 = jax.random.normal(k_h2, (B, latent_dim, 15, 15), jnp.float32)
    _check(h2, params)

    # Multi-tile + ragged last tile (24x24 = 576 lanes, forced 256-lane tiles)
    # exercises the partial-edge-block path with no wrapper pad/slice.
    h3 = jax.random.normal(k_h3, (B, latent_dim, 24, 24), jnp.float32)
    _check(h3, params, tile_s=256)

    print("KERNEL_OK")
</pallas_src>

<mosaic_0001>
module attributes {stable_mosaic.version = 11 : i64} {
  func.func @_dgauss_kernel(%arg0: i32, %arg1: i32, %arg2: memref<2x8x256xf32, #tpu.memory_space<vmem>>, %arg3: memref<6x8xf32, #tpu.memory_space<vmem>>, %arg4: memref<6x1xf32, #tpu.memory_space<vmem>>, %arg5: memref<2x3x256xf32, #tpu.memory_space<vmem>>, %arg6: memref<2x3x256xf32, #tpu.memory_space<vmem>>) attributes {dimension_semantics = [#tpu.dimension_semantics<parallel>, #tpu.dimension_semantics<parallel>], iteration_bounds = array<i64: 1, 1>, scalar_prefetch = 0 : i64, scratch_operands = 0 : i64, tpu.core_type = #tpu.core_type<tc>, window_params = [{transform_indices = @transform_0, window_bounds = array<i64: 2, 8, 256>}, {pipeline_mode = #tpu.pipeline_mode<synchronous>, transform_indices = @transform_1, window_bounds = array<i64: 6, 8>}, {pipeline_mode = #tpu.pipeline_mode<synchronous>, transform_indices = @transform_2, window_bounds = array<i64: 6, 1>}, {transform_indices = @transform_3, window_bounds = array<i64: 2, 3, 256>}, {transform_indices = @transform_4, window_bounds = array<i64: 2, 3, 256>}]} {
    %c0 = arith.constant 0 : index
    %c0_0 = arith.constant 0 : index
    %0 = vector.load %arg3[%c0, %c0_0] : memref<6x8xf32, #tpu.memory_space<vmem>>, vector<6x8xf32>
    %c0_1 = arith.constant 0 : index
    %c0_2 = arith.constant 0 : index
    %1 = vector.load %arg4[%c0_1, %c0_2] : memref<6x1xf32, #tpu.memory_space<vmem>>, vector<6x1xf32>
    %2 = vector.shape_cast %1 : vector<6x1xf32> to vector<6x1xf32>
    %3 = vector.broadcast %2 : vector<6x1xf32> to vector<6x256xf32>
    %4 = vector.extract_strided_slice %0 {offsets = [0, 0], sizes = [6, 1], strides = [1, 1]} : vector<6x8xf32> to vector<6x1xf32>
    %c0_3 = arith.constant 0 : index
    %c0_4 = arith.constant 0 : index
    %c0_5 = arith.constant 0 : index
    %5 = vector.load %arg2[%c0_3, %c0_4, %c0_5] : memref<2x8x256xf32, #tpu.memory_space<vmem>>, vector<1x1x256xf32>
    %6 = vector.shape_cast %5 : vector<1x1x256xf32> to vector<1x256xf32>
    %7 = vector.broadcast %4 : vector<6x1xf32> to vector<6x256xf32>
    %8 = vector.broadcast %6 : vector<1x256xf32> to vector<6x256xf32>
    %9 = arith.mulf %7, %8 : vector<6x256xf32>
    %10 = arith.addf %3, %9 : vector<6x256xf32>
    %11 = vector.extract_strided_slice %0 {offsets = [0, 1], sizes = [6, 1], strides = [1, 1]} : vector<6x8xf32> to vector<6x1xf32>
    %c0_6 = arith.constant 0 : index
    %c1 = arith.constant 1 : index
    %c0_7 = arith.constant 0 : index
    %12 = vector.load %arg2[%c0_6, %c1, %c0_7] : memref<2x8x256xf32, #tpu.memory_space<vmem>>, vector<1x1x256xf32>
    %13 = vector.shape_cast %12 : vector<1x1x256xf32> to vector<1x256xf32>
    %14 = vector.broadcast %11 : vector<6x1xf32> to vector<6x256xf32>
    %15 = vector.broadcast %13 : vector<1x256xf32> to vector<6x256xf32>
    %16 = arith.mulf %14, %15 : vector<6x256xf32>
    %17 = arith.addf %10, %16 : vector<6x256xf32>
    %18 = vector.extract_strided_slice %0 {offsets = [0, 2], sizes = [6, 1], strides = [1, 1]} : vector<6x8xf32> to vector<6x1xf32>
    %c0_8 = arith.constant 0 : index
    %c2 = arith.constant 2 : index
    %c0_9 = arith.constant 0 : index
    %19 = vector.load %arg2[%c0_8, %c2, %c0_9] : memref<2x8x256xf32, #tpu.memory_space<vmem>>, vector<1x1x256xf32>
    %20 = vector.shape_cast %19 : vector<1x1x256xf32> to vector<1x256xf32>
    %21 = vector.broadcast %18 : vector<6x1xf32> to vector<6x256xf32>
    %22 = vector.broadcast %20 : vector<1x256xf32> to vector<6x256xf32>
    %23 = arith.mulf %21, %22 : vector<6x256xf32>
    %24 = arith.addf %17, %23 : vector<6x256xf32>
    %25 = vector.extract_strided_slice %0 {offsets = [0, 3], sizes = [6, 1], strides = [1, 1]} : vector<6x8xf32> to vector<6x1xf32>
    %c0_10 = arith.constant 0 : index
    %c3 = arith.constant 3 : index
    %c0_11 = arith.constant 0 : index
    %26 = vector.load %arg2[%c0_10, %c3, %c0_11] : memref<2x8x256xf32, #tpu.memory_space<vmem>>, vector<1x1x256xf32>
    %27 = vector.shape_cast %26 : vector<1x1x256xf32> to vector<1x256xf32>
    %28 = vector.broadcast %25 : vector<6x1xf32> to vector<6x256xf32>
    %29 = vector.broadcast %27 : vector<1x256xf32> to vector<6x256xf32>
    %30 = arith.mulf %28, %29 : vector<6x256xf32>
    %31 = arith.addf %24, %30 : vector<6x256xf32>
    %32 = vector.extract_strided_slice %0 {offsets = [0, 4], sizes = [6, 1], strides = [1, 1]} : vector<6x8xf32> to vector<6x1xf32>
    %c0_12 = arith.constant 0 : index
    %c4 = arith.constant 4 : index
    %c0_13 = arith.constant 0 : index
    %33 = vector.load %arg2[%c0_12, %c4, %c0_13] : memref<2x8x256xf32, #tpu.memory_space<vmem>>, vector<1x1x256xf32>
    %34 = vector.shape_cast %33 : vector<1x1x256xf32> to vector<1x256xf32>
    %35 = vector.broadcast %32 : vector<6x1xf32> to vector<6x256xf32>
    %36 = vector.broadcast %34 : vector<1x256xf32> to vector<6x256xf32>
    %37 = arith.mulf %35, %36 : vector<6x256xf32>
    %38 = arith.addf %31, %37 : vector<6x256xf32>
    %39 = vector.extract_strided_slice %0 {offsets = [0, 5], sizes = [6, 1], strides = [1, 1]} : vector<6x8xf32> to vector<6x1xf32>
    %c0_14 = arith.constant 0 : index
    %c5 = arith.constant 5 : index
    %c0_15 = arith.constant 0 : index
    %40 = vector.load %arg2[%c0_14, %c5, %c0_15] : memref<2x8x256xf32, #tpu.memory_space<vmem>>, vector<1x1x256xf32>
    %41 = vector.shape_cast %40 : vector<1x1x256xf32> to vector<1x256xf32>
    %42 = vector.broadcast %39 : vector<6x1xf32> to vector<6x256xf32>
    %43 = vector.broadcast %41 : vector<1x256xf32> to vector<6x256xf32>
    %44 = arith.mulf %42, %43 : vector<6x256xf32>
    %45 = arith.addf %38, %44 : vector<6x256xf32>
    %46 = vector.extract_strided_slice %0 {offsets = [0, 6], sizes = [6, 1], strides = [1, 1]} : vector<6x8xf32> to vector<6x1xf32>
    %c0_16 = arith.constant 0 : index
    %c6 = arith.constant 6 : index
    %c0_17 = arith.constant 0 : index
    %47 = vector.load %arg2[%c0_16, %c6, %c0_17] : memref<2x8x256xf32, #tpu.memory_space<vmem>>, vector<1x1x256xf32>
    %48 = vector.shape_cast %47 : vector<1x1x256xf32> to vector<1x256xf32>
    %49 = vector.broadcast %46 : vector<6x1xf32> to vector<6x256xf32>
    %50 = vector.broadcast %48 : vector<1x256xf32> to vector<6x256xf32>
    %51 = arith.mulf %49, %50 : vector<6x256xf32>
    %52 = arith.addf %45, %51 : vector<6x256xf32>
    %53 = vector.extract_strided_slice %0 {offsets = [0, 7], sizes = [6, 1], strides = [1, 1]} : vector<6x8xf32> to vector<6x1xf32>
    %c0_18 = arith.constant 0 : index
    %c7 = arith.constant 7 : index
    %c0_19 = arith.constant 0 : index
    %54 = vector.load %arg2[%c0_18, %c7, %c0_19] : memref<2x8x256xf32, #tpu.memory_space<vmem>>, vector<1x1x256xf32>
    %55 = vector.shape_cast %54 : vector<1x1x256xf32> to vector<1x256xf32>
    %56 = vector.broadcast %53 : vector<6x1xf32> to vector<6x256xf32>
    %57 = vector.broadcast %55 : vector<1x256xf32> to vector<6x256xf32>
    %58 = arith.mulf %56, %57 : vector<6x256xf32>
    %59 = arith.addf %52, %58 : vector<6x256xf32>
    %60 = vector.extract_strided_slice %59 {offsets = [0, 0], sizes = [3, 256], strides = [1, 1]} : vector<6x256xf32> to vector<3x256xf32>
    %c0_20 = arith.constant 0 : index
    %c0_21 = arith.constant 0 : index
    %c0_22 = arith.constant 0 : index
    %61 = vector.load %arg5[%c0_20, %c0_21, %c0_22] : memref<2x3x256xf32, #tpu.memory_space<vmem>>, vector<1x3x256xf32>
    %62 = vector.shape_cast %61 : vector<1x3x256xf32> to vector<3x256xf32>
    %63 = vector.shape_cast %60 : vector<3x256xf32> to vector<1x3x256xf32>
    tpu.vector_store %arg5[%c0_20, %c0_21, %c0_22], %63 {strides = array<i32>} : memref<2x3x256xf32, #tpu.memory_space<vmem>>, vector<1x3x256xf32>,
    %64 = vector.extract_strided_slice %59 {offsets = [3, 0], sizes = [3, 256], strides = [1, 1]} : vector<6x256xf32> to vector<3x256xf32>
    %cst = arith.constant -9.000000e+00 : f32
    %65 = vector.broadcast %cst : f32 to vector<3x256xf32>
    %66 = arith.maximumf %64, %65 : vector<3x256xf32>
    %c0_23 = arith.constant 0 : index
    %c0_24 = arith.constant 0 : index
    %c0_25 = arith.constant 0 : index
    %67 = vector.load %arg6[%c0_23, %c0_24, %c0_25] : memref<2x3x256xf32, #tpu.memory_space<vmem>>, vector<1x3x256xf32>
    %68 = vector.shape_cast %67 : vector<1x3x256xf32> to vector<3x256xf32>
    %69 = vector.shape_cast %66 : vector<3x256xf32> to vector<1x3x256xf32>
    tpu.vector_store %arg6[%c0_23, %c0_24, %c0_25], %69 {strides = array<i32>} : memref<2x3x256xf32, #tpu.memory_space<vmem>>, vector<1x3x256xf32>,
    %70 = vector.shape_cast %1 : vector<6x1xf32> to vector<6x1xf32>
    %71 = vector.broadcast %70 : vector<6x1xf32> to vector<6x256xf32>
    %72 = vector.extract_strided_slice %0 {offsets = [0, 0], sizes = [6, 1], strides = [1, 1]} : vector<6x8xf32> to vector<6x1xf32>
    %c1_26 = arith.constant 1 : index
    %c0_27 = arith.constant 0 : index
    %c0_28 = arith.constant 0 : index
    %73 = vector.load %arg2[%c1_26, %c0_27, %c0_28] : memref<2x8x256xf32, #tpu.memory_space<vmem>>, vector<1x1x256xf32>
    %74 = vector.shape_cast %73 : vector<1x1x256xf32> to vector<1x256xf32>
    %75 = vector.broadcast %72 : vector<6x1xf32> to vector<6x256xf32>
    %76 = vector.broadcast %74 : vector<1x256xf32> to vector<6x256xf32>
    %77 = arith.mulf %75, %76 : vector<6x256xf32>
    %78 = arith.addf %71, %77 : vector<6x256xf32>
    %79 = vector.extract_strided_slice %0 {offsets = [0, 1], sizes = [6, 1], strides = [1, 1]} : vector<6x8xf32> to vector<6x1xf32>
    %c1_29 = arith.constant 1 : index
    %c1_30 = arith.constant 1 : index
    %c0_31 = arith.constant 0 : index
    %80 = vector.load %arg2[%c1_29, %c1_30, %c0_31] : memref<2x8x256xf32, #tpu.memory_space<vmem>>, vector<1x1x256xf32>
    %81 = vector.shape_cast %80 : vector<1x1x256xf32> to vector<1x256xf32>
    %82 = vector.broadcast %79 : vector<6x1xf32> to vector<6x256xf32>
    %83 = vector.broadcast %81 : vector<1x256xf32> to vector<6x256xf32>
    %84 = arith.mulf %82, %83 : vector<6x256xf32>
    %85 = arith.addf %78, %84 : vector<6x256xf32>
    %86 = vector.extract_strided_slice %0 {offsets = [0, 2], sizes = [6, 1], strides = [1, 1]} : vector<6x8xf32> to vector<6x1xf32>
    %c1_32 = arith.constant 1 : index
    %c2_33 = arith.constant 2 : index
    %c0_34 = arith.constant 0 : index
    %87 = vector.load %arg2[%c1_32, %c2_33, %c0_34] : memref<2x8x256xf32, #tpu.memory_space<vmem>>, vector<1x1x256xf32>
    %88 = vector.shape_cast %87 : vector<1x1x256xf32> to vector<1x256xf32>
    %89 = vector.broadcast %86 : vector<6x1xf32> to vector<6x256xf32>
    %90 = vector.broadcast %88 : vector<1x256xf32> to vector<6x256xf32>
    %91 = arith.mulf %89, %90 : vector<6x256xf32>
    %92 = arith.addf %85, %91 : vector<6x256xf32>
    %93 = vector.extract_strided_slice %0 {offsets = [0, 3], sizes = [6, 1], strides = [1, 1]} : vector<6x8xf32> to vector<6x1xf32>
    %c1_35 = arith.constant 1 : index
    %c3_36 = arith.constant 3 : index
    %c0_37 = arith.constant 0 : index
    %94 = vector.load %arg2[%c1_35, %c3_36, %c0_37] : memref<2x8x256xf32, #tpu.memory_space<vmem>>, vector<1x1x256xf32>
    %95 = vector.shape_cast %94 : vector<1x1x256xf32> to vector<1x256xf32>
    %96 = vector.broadcast %93 : vector<6x1xf32> to vector<6x256xf32>
    %97 = vector.broadcast %95 : vector<1x256xf32> to vector<6x256xf32>
    %98 = arith.mulf %96, %97 : vector<6x256xf32>
    %99 = arith.addf %92, %98 : vector<6x256xf32>
    %100 = vector.extract_strided_slice %0 {offsets = [0, 4], sizes = [6, 1], strides = [1, 1]} : vector<6x8xf32> to vector<6x1xf32>
    %c1_38 = arith.constant 1 : index
    %c4_39 = arith.constant 4 : index
    %c0_40 = arith.constant 0 : index
    %101 = vector.load %arg2[%c1_38, %c4_39, %c0_40] : memref<2x8x256xf32, #tpu.memory_space<vmem>>, vector<1x1x256xf32>
    %102 = vector.shape_cast %101 : vector<1x1x256xf32> to vector<1x256xf32>
    %103 = vector.broadcast %100 : vector<6x1xf32> to vector<6x256xf32>
    %104 = vector.broadcast %102 : vector<1x256xf32> to vector<6x256xf32>
    %105 = arith.mulf %103, %104 : vector<6x256xf32>
    %106 = arith.addf %99, %105 : vector<6x256xf32>
    %107 = vector.extract_strided_slice %0 {offsets = [0, 5], sizes = [6, 1], strides = [1, 1]} : vector<6x8xf32> to vector<6x1xf32>
    %c1_41 = arith.constant 1 : index
    %c5_42 = arith.constant 5 : index
    %c0_43 = arith.constant 0 : index
    %108 = vector.load %arg2[%c1_41, %c5_42, %c0_43] : memref<2x8x256xf32, #tpu.memory_space<vmem>>, vector<1x1x256xf32>
    %109 = vector.shape_cast %108 : vector<1x1x256xf32> to vector<1x256xf32>
    %110 = vector.broadcast %107 : vector<6x1xf32> to vector<6x256xf32>
    %111 = vector.broadcast %109 : vector<1x256xf32> to vector<6x256xf32>
    %112 = arith.mulf %110, %111 : vector<6x256xf32>
    %113 = arith.addf %106, %112 : vector<6x256xf32>
    %114 = vector.extract_strided_slice %0 {offsets = [0, 6], sizes = [6, 1], strides = [1, 1]} : vector<6x8xf32> to vector<6x1xf32>
    %c1_44 = arith.constant 1 : index
    %c6_45 = arith.constant 6 : index
    %c0_46 = arith.constant 0 : index
    %115 = vector.load %arg2[%c1_44, %c6_45, %c0_46] : memref<2x8x256xf32, #tpu.memory_space<vmem>>, vector<1x1x256xf32>
    %116 = vector.shape_cast %115 : vector<1x1x256xf32> to vector<1x256xf32>
    %117 = vector.broadcast %114 : vector<6x1xf32> to vector<6x256xf32>
    %118 = vector.broadcast %116 : vector<1x256xf32> to vector<6x256xf32>
    %119 = arith.mulf %117, %118 : vector<6x256xf32>
    %120 = arith.addf %113, %119 : vector<6x256xf32>
    %121 = vector.extract_strided_slice %0 {offsets = [0, 7], sizes = [6, 1], strides = [1, 1]} : vector<6x8xf32> to vector<6x1xf32>
    %c1_47 = arith.constant 1 : index
    %c7_48 = arith.constant 7 : index
    %c0_49 = arith.constant 0 : index
    %122 = vector.load %arg2[%c1_47, %c7_48, %c0_49] : memref<2x8x256xf32, #tpu.memory_space<vmem>>, vector<1x1x256xf32>
    %123 = vector.shape_cast %122 : vector<1x1x256xf32> to vector<1x256xf32>
    %124 = vector.broadcast %121 : vector<6x1xf32> to vector<6x256xf32>
    %125 = vector.broadcast %123 : vector<1x256xf32> to vector<6x256xf32>
    %126 = arith.mulf %124, %125 : vector<6x256xf32>
    %127 = arith.addf %120, %126 : vector<6x256xf32>
    %128 = vector.extract_strided_slice %127 {offsets = [0, 0], sizes = [3, 256], strides = [1, 1]} : vector<6x256xf32> to vector<3x256xf32>
    %c1_50 = arith.constant 1 : index
    %c0_51 = arith.constant 0 : index
    %c0_52 = arith.constant 0 : index
    %129 = vector.load %arg5[%c1_50, %c0_51, %c0_52] : memref<2x3x256xf32, #tpu.memory_space<vmem>>, vector<1x3x256xf32>
    %130 = vector.shape_cast %129 : vector<1x3x256xf32> to vector<3x256xf32>
    %131 = vector.shape_cast %128 : vector<3x256xf32> to vector<1x3x256xf32>
    tpu.vector_store %arg5[%c1_50, %c0_51, %c0_52], %131 {strides = array<i32>} : memref<2x3x256xf32, #tpu.memory_space<vmem>>, vector<1x3x256xf32>,
    %132 = vector.extract_strided_slice %127 {offsets = [3, 0], sizes = [3, 256], strides = [1, 1]} : vector<6x256xf32> to vector<3x256xf32>
    %cst_53 = arith.constant -9.000000e+00 : f32
    %133 = vector.broadcast %cst_53 : f32 to vector<3x256xf32>
    %134 = arith.maximumf %132, %133 : vector<3x256xf32>
    %c1_54 = arith.constant 1 : index
    %c0_55 = arith.constant 0 : index
    %c0_56 = arith.constant 0 : index
    %135 = vector.load %arg6[%c1_54, %c0_55, %c0_56] : memref<2x3x256xf32, #tpu.memory_space<vmem>>, vector<1x3x256xf32>
    %136 = vector.shape_cast %135 : vector<1x3x256xf32> to vector<3x256xf32>
    %137 = vector.shape_cast %134 : vector<3x256xf32> to vector<1x3x256xf32>
    tpu.vector_store %arg6[%c1_54, %c0_55, %c0_56], %137 {strides = array<i32>} : memref<2x3x256xf32, #tpu.memory_space<vmem>>, vector<1x3x256xf32>,
    return
  }
  func.func @transform_0(%arg0: i32, %arg1: i32) -> (i32, i32, i32) {
    %c0_i32 = arith.constant 0 : i32
    %c0_i32_0 = arith.constant 0 : i32
    return %arg0, %c0_i32, %arg1 : i32, i32, i32
  }
  func.func @transform_1(%arg0: i32, %arg1: i32) -> (i32, i32) {
    %c0_i32 = arith.constant 0 : i32
    %c0_i32_0 = arith.constant 0 : i32
    %c0_i32_1 = arith.constant 0 : i32
    return %c0_i32, %c0_i32_0 : i32, i32
  }
  func.func @transform_2(%arg0: i32, %arg1: i32) -> (i32, i32) {
    %c0_i32 = arith.constant 0 : i32
    %c0_i32_0 = arith.constant 0 : i32
    %c0_i32_1 = arith.constant 0 : i32
    return %c0_i32, %c0_i32_0 : i32, i32
  }
  func.func @transform_3(%arg0: i32, %arg1: i32) -> (i32, i32, i32) {
    %c0_i32 = arith.constant 0 : i32
    %c0_i32_0 = arith.constant 0 : i32
    return %arg0, %c0_i32, %arg1 : i32, i32, i32
  }
  func.func @transform_4(%arg0: i32, %arg1: i32) -> (i32, i32, i32) {
    %c0_i32 = arith.constant 0 : i32
    %c0_i32_0 = arith.constant 0 : i32
    return %arg0, %c0_i32, %arg1 : i32, i32, i32
  }
}

</mosaic_0001>

<llo_original>
// kernel: dgauss_forward.1
$region0: #{dgauss_forward.1}
  #allocation0 [shape = 'u32[]', space=smem, size = 0x4, offset = 0x4, fixed_abs, tag = 'smem constant byte address 0x4 - core index']
  #allocation1 [shape = 'u32[144,128]{1,0:T(1,128)}', space=vmem, size = 0x12000, scoped, tag = 'internal scratch']
  %s0 = inlined_call_operand.vmem [shape: f32[2,8,256], index: 0, kind: input, shape index: {}]
  %s1 = inlined_call_operand.vmem [shape: f32[6,8], index: 1, kind: input, shape index: {}]
  %s2 = inlined_call_operand.vmem [shape: f32[6,1], index: 2, kind: input, shape index: {}]
  %s3 = inlined_call_operand.vmem [shape: f32[2,3,256], index: 3, kind: output, shape index: {0}]
  %s4 = inlined_call_operand.vmem [shape: f32[2,3,256], index: 4, kind: output, shape index: {1}]
  %5 = xla_tuple %s3, %s4
  %s6 = sld [smem:[#allocation0]]
  $region30: #{dgauss_forward.1} parent=0
    _
  %s8 = ssub.s32 1, %s6
  %s9 = scalar_select 0, %s8, %s6
  // Predicated region
  $region2: #{dgauss_forward.1} parent=0 // pred_check
    _
  $region3: #{dgauss_forward.1} parent=0 // pred_check_branch
    %11 = sbr.rel (0) target = $region5
  $region4: #{dgauss_forward.1} parent=0 // pred_region
    _
  $region5: #{dgauss_forward.1} parent=0 // pred_fallthru
    _
  // Predicated region
  $region6: #{dgauss_forward.1} parent=0 // pred_check
    _
  $region7: #{dgauss_forward.1} parent=0 // pred_check_branch
    %13 = sbr.rel (0) target = $region9
  $region8: #{dgauss_forward.1} parent=0 // pred_region
    _
  $region9: #{dgauss_forward.1} parent=0 // pred_fallthru
    _
  // Predicated region
  $region10: #{dgauss_forward.1} parent=0 // pred_check
    _
  $region11: #{dgauss_forward.1} parent=0 // pred_check_branch
    %15 = sbr.rel (0) target = $region13
  $region12: #{dgauss_forward.1} parent=0 // pred_region
    _
  $region13: #{dgauss_forward.1} parent=0 // pred_fallthru
    _
  %v16 = vld [vmem:[%s1] sm:$0x3f]
  %v17 = vld [vmem:[%s2] sm:$0x3f]
  %19 = vset.pattern.permute.xlu0 0
  %20 = vperm.xlu0 %19, %v17
  %v21 = vpop.permute.xlu0 %20
  %v23 = vld [vmem:[%s0] ss:$8 sm:$0x3]
  %25 = vset.pattern.permute.xlu0 0
  %26 = vperm.xlu0 %25, %v16
  %v27 = vpop.permute.xlu0 %26
  %v30 = vlaneseq
  %v31 = vshrl.u32 %v30, 7
  %v32 = vsub.s32 0, %v31
  %v33 = vrot.slane %v23, %v32
  %v34 = vlaneseq
  %v35 = vshrl.u32 %v34, 7
  %v36 = vsub.s32 1, %v35
  %v37 = vrot.slane %v23, %v36
  %v40 = vmul.f32 %v27, %v33
  %v41 = vmul.f32 %v27, %v37
  %v42 = vadd.f32 %v21, %v40
  %v43 = vadd.f32 %v21, %v41
  %s44 = scalar_lea.vmem %s0, 1
  %v45 = vld [vmem:[%s44] ss:$8 sm:$0x3]
  %46 = vset.pattern.permute.xlu0 1
  %47 = vperm.xlu0 %46, %v16
  %v48 = vpop.permute.xlu0 %47
  %v51 = vlaneseq
  %v52 = vshrl.u32 %v51, 7
  %v53 = vsub.s32 0, %v52
  %v54 = vrot.slane %v45, %v53
  %v55 = vlaneseq
  %v56 = vshrl.u32 %v55, 7
  %v57 = vsub.s32 1, %v56
  %v58 = vrot.slane %v45, %v57
  %v61 = vmul.f32 %v48, %v54
  %v62 = vmul.f32 %v48, %v58
  %v63 = vadd.f32 %v42, %v61
  %v64 = vadd.f32 %v43, %v62
  %s65 = scalar_lea.vmem %s0, 2
  %v66 = vld [vmem:[%s65] ss:$8 sm:$0x3]
  %67 = vset.pattern.permute.xlu0 2
  %68 = vperm.xlu0 %67, %v16
  %v69 = vpop.permute.xlu0 %68
  %v72 = vlaneseq
  %v73 = vshrl.u32 %v72, 7
  %v74 = vsub.s32 0, %v73
  %v75 = vrot.slane %v66, %v74
  %v76 = vlaneseq
  %v77 = vshrl.u32 %v76, 7
  %v78 = vsub.s32 1, %v77
  %v79 = vrot.slane %v66, %v78
  %v82 = vmul.f32 %v69, %v75
  %v83 = vmul.f32 %v69, %v79
  %v84 = vadd.f32 %v63, %v82
  %v85 = vadd.f32 %v64, %v83
  %s86 = scalar_lea.vmem %s0, 3
  %v87 = vld [vmem:[%s86] ss:$8 sm:$0x3]
  %88 = vset.pattern.permute.xlu0 3
  %89 = vperm.xlu0 %88, %v16
  %v90 = vpop.permute.xlu0 %89
  %v93 = vlaneseq
  %v94 = vshrl.u32 %v93, 7
  %v95 = vsub.s32 0, %v94
  %v96 = vrot.slane %v87, %v95
  %v97 = vlaneseq
  %v98 = vshrl.u32 %v97, 7
  %v99 = vsub.s32 1, %v98
  %v100 = vrot.slane %v87, %v99
  %v103 = vmul.f32 %v90, %v96
  %v104 = vmul.f32 %v90, %v100
  %v105 = vadd.f32 %v84, %v103
  %v106 = vadd.f32 %v85, %v104
  %s107 = scalar_lea.vmem %s0, 4
  %v108 = vld [vmem:[%s107] ss:$8 sm:$0x3]
  %109 = vset.pattern.permute.xlu0 4
  %110 = vperm.xlu0 %109, %v16
  %v111 = vpop.permute.xlu0 %110
  %v114 = vlaneseq
  %v115 = vshrl.u32 %v114, 7
  %v116 = vsub.s32 0, %v115
  %v117 = vrot.slane %v108, %v116
  %v118 = vlaneseq
  %v119 = vshrl.u32 %v118, 7
  %v120 = vsub.s32 1, %v119
  %v121 = vrot.slane %v108, %v120
  %v124 = vmul.f32 %v111, %v117
  %v125 = vmul.f32 %v111, %v121
  %v126 = vadd.f32 %v105, %v124
  %v127 = vadd.f32 %v106, %v125
  %s128 = scalar_lea.vmem %s0, 5
  %v129 = vld [vmem:[%s128] ss:$8 sm:$0x3]
  %130 = vset.pattern.permute.xlu0 5
  %131 = vperm.xlu0 %130, %v16
  %v132 = vpop.permute.xlu0 %131
  %v135 = vlaneseq
  %v136 = vshrl.u32 %v135, 7
  %v137 = vsub.s32 0, %v136
  %v138 = vrot.slane %v129, %v137
  %v139 = vlaneseq
  %v140 = vshrl.u32 %v139, 7
  %v141 = vsub.s32 1, %v140
  %v142 = vrot.slane %v129, %v141
  %v145 = vmul.f32 %v132, %v138
  %v146 = vmul.f32 %v132, %v142
  %v147 = vadd.f32 %v126, %v145
  %v148 = vadd.f32 %v127, %v146
  %s149 = scalar_lea.vmem %s0, 6
  %v150 = vld [vmem:[%s149] ss:$8 sm:$0x3]
  %151 = vset.pattern.permute.xlu0 6
  %152 = vperm.xlu0 %151, %v16
  %v153 = vpop.permute.xlu0 %152
  %v156 = vlaneseq
  %v157 = vshrl.u32 %v156, 7
  %v158 = vsub.s32 0, %v157
  %v159 = vrot.slane %v150, %v158
  %v160 = vlaneseq
  %v161 = vshrl.u32 %v160, 7
  %v162 = vsub.s32 1, %v161
  %v163 = vrot.slane %v150, %v162
  %v166 = vmul.f32 %v153, %v159
  %v167 = vmul.f32 %v153, %v163
  %v168 = vadd.f32 %v147, %v166
  %v169 = vadd.f32 %v148, %v167
  %s170 = scalar_lea.vmem %s0, 7
  %v171 = vld [vmem:[%s170] ss:$8 sm:$0x3]
  %172 = vset.pattern.permute.xlu0 7
  %173 = vperm.xlu0 %172, %v16
  %v174 = vpop.permute.xlu0 %173
  %v177 = vlaneseq
  %v178 = vshrl.u32 %v177, 7
  %v179 = vsub.s32 0, %v178
  %v180 = vrot.slane %v171, %v179
  %v181 = vlaneseq
  %v182 = vshrl.u32 %v181, 7
  %v183 = vsub.s32 1, %v182
  %v184 = vrot.slane %v171, %v183
  %v187 = vmul.f32 %v174, %v180
  %v188 = vmul.f32 %v174, %v184
  %v189 = vadd.f32 %v168, %v187
  %v190 = vadd.f32 %v169, %v188
  %v193 = vcombine.low %v189, %v190
  %195 = vst [vmem:[%s3] sm:$0x77] %v193
  %v196 = vmax.f32 %v189, -9.0
  %v197 = vmax.f32 %v190, -9.0
  %v200 = vcombine.low %v196, %v197
  %v201 = vcombine.high %v196, %v197
  %vm202 = vcmask 1040384
  %vm203 = vcmask 1044484
  %vm204 = vmor %vm202, %vm203
  %v205 = vrot.slane %v200, 7
  %v206 = vrot.slane %v205, 4
  %v207 = vrot.slane %v201, 7
  %v208 = vsel %vm204, %v206, %v207
  %210 = vst [vmem:[%s4] sm:$0x77] %v208
  %s211 = scalar_lea.vmem %s0, 16
  %v212 = vld [vmem:[%s211] ss:$8 sm:$0x3]
  %v214 = vlaneseq
  %v215 = vshrl.u32 %v214, 7
  %v216 = vsub.s32 0, %v215
  %v217 = vrot.slane %v212, %v216
  %v218 = vlaneseq
  %v219 = vshrl.u32 %v218, 7
  %v220 = vsub.s32 1, %v219
  %v221 = vrot.slane %v212, %v220
  %v224 = vmul.f32 %v27, %v217
  %v225 = vmul.f32 %v27, %v221
  %v226 = vadd.f32 %v21, %v224
  %v227 = vadd.f32 %v21, %v225
  %s228 = scalar_lea.vmem %s211, 1
  %v229 = vld [vmem:[%s228] ss:$8 sm:$0x3]
  %v231 = vlaneseq
  %v232 = vshrl.u32 %v231, 7
  %v233 = vsub.s32 0, %v232
  %v234 = vrot.slane %v229, %v233
  %v235 = vlaneseq
  %v236 = vshrl.u32 %v235, 7
  %v237 = vsub.s32 1, %v236
  %v238 = vrot.slane %v229, %v237
  %v241 = vmul.f32 %v48, %v234
  %v242 = vmul.f32 %v48, %v238
  %v243 = vadd.f32 %v226, %v241
  %v244 = vadd.f32 %v227, %v242
  %s245 = scalar_lea.vmem %s211, 2
  %v246 = vld [vmem:[%s245] ss:$8 sm:$0x3]
  %v248 = vlaneseq
  %v249 = vshrl.u32 %v248, 7
  %v250 = vsub.s32 0, %v249
  %v251 = vrot.slane %v246, %v250
  %v252 = vlaneseq
  %v253 = vshrl.u32 %v252, 7
  %v254 = vsub.s32 1, %v253
  %v255 = vrot.slane %v246, %v254
  %v258 = vmul.f32 %v69, %v251
  %v259 = vmul.f32 %v69, %v255
  %v260 = vadd.f32 %v243, %v258
  %v261 = vadd.f32 %v244, %v259
  %s262 = scalar_lea.vmem %s211, 3
  %v263 = vld [vmem:[%s262] ss:$8 sm:$0x3]
  %v265 = vlaneseq
  %v266 = vshrl.u32 %v265, 7
  %v267 = vsub.s32 0, %v266
  %v268 = vrot.slane %v263, %v267
  %v269 = vlaneseq
  %v270 = vshrl.u32 %v269, 7
  %v271 = vsub.s32 1, %v270
  %v272 = vrot.slane %v263, %v271
  %v275 = vmul.f32 %v90, %v268
  %v276 = vmul.f32 %v90, %v272
  %v277 = vadd.f32 %v260, %v275
  %v278 = vadd.f32 %v261, %v276
  %s279 = scalar_lea.vmem %s211, 4
  %v280 = vld [vmem:[%s279] ss:$8 sm:$0x3]
  %v282 = vlaneseq
  %v283 = vshrl.u32 %v282, 7
  %v284 = vsub.s32 0, %v283
  %v285 = vrot.slane %v280, %v284
  %v286 = vlaneseq
  %v287 = vshrl.u32 %v286, 7
  %v288 = vsub.s32 1, %v287
  %v289 = vrot.slane %v280, %v288
  %v292 = vmul.f32 %v111, %v285
  %v293 = vmul.f32 %v111, %v289
  %v294 = vadd.f32 %v277, %v292
  %v295 = vadd.f32 %v278, %v293
  %s296 = scalar_lea.vmem %s211, 5
  %v297 = vld [vmem:[%s296] ss:$8 sm:$0x3]
  %v299 = vlaneseq
  %v300 = vshrl.u32 %v299, 7
  %v301 = vsub.s32 0, %v300
  %v302 = vrot.slane %v297, %v301
  %v303 = vlaneseq
  %v304 = vshrl.u32 %v303, 7
  %v305 = vsub.s32 1, %v304
  %v306 = vrot.slane %v297, %v305
  %v309 = vmul.f32 %v132, %v302
  %v310 = vmul.f32 %v132, %v306
  %v311 = vadd.f32 %v294, %v309
  %v312 = vadd.f32 %v295, %v310
  %s313 = scalar_lea.vmem %s211, 6
  %v314 = vld [vmem:[%s313] ss:$8 sm:$0x3]
  %v316 = vlaneseq
  %v317 = vshrl.u32 %v316, 7
  %v318 = vsub.s32 0, %v317
  %v319 = vrot.slane %v314, %v318
  %v320 = vlaneseq
  %v321 = vshrl.u32 %v320, 7
  %v322 = vsub.s32 1, %v321
  %v323 = vrot.slane %v314, %v322
  %v326 = vmul.f32 %v153, %v319
  %v327 = vmul.f32 %v153, %v323
  %v328 = vadd.f32 %v311, %v326
  %v329 = vadd.f32 %v312, %v327
  %s330 = scalar_lea.vmem %s211, 7
  %v331 = vld [vmem:[%s330] ss:$8 sm:$0x3]
  %v333 = vlaneseq
  %v334 = vshrl.u32 %v333, 7
  %v335 = vsub.s32 0, %v334
  %v336 = vrot.slane %v331, %v335
  %v337 = vlaneseq
  %v338 = vshrl.u32 %v337, 7
  %v339 = vsub.s32 1, %v338
  %v340 = vrot.slane %v331, %v339
  %v343 = vmul.f32 %v174, %v336
  %v344 = vmul.f32 %v174, %v340
  %v345 = vadd.f32 %v328, %v343
  %v346 = vadd.f32 %v329, %v344
  %v349 = vcombine.low %v345, %v346
  %s351 = scalar_lea.vmem %s3, 8
  %352 = vst [vmem:[%s351] sm:$0x77] %v349
  %v353 = vmax.f32 %v345, -9.0
  %v354 = vmax.f32 %v346, -9.0
  %v357 = vcombine.low %v353, %v354
  %v358 = vcombine.high %v353, %v354
  %v359 = vrot.slane %v357, 7
  %v360 = vrot.slane %v359, 4
  %v361 = vrot.slane %v358, 7
  %v362 = vsel %vm204, %v360, %v361
  %s364 = scalar_lea.vmem %s4, 8
  %365 = vst [vmem:[%s364] sm:$0x77] %v362
  // Predicated region
  $region14: #{dgauss_forward.1} parent=0 // pred_check
    _
  $region15: #{dgauss_forward.1} parent=0 // pred_check_branch
    %367 = sbr.rel (0) target = $region17
  $region16: #{dgauss_forward.1} parent=0 // pred_region
    _
  $region17: #{dgauss_forward.1} parent=0 // pred_fallthru
    _
  // Predicated region
  $region18: #{dgauss_forward.1} parent=0 // pred_check
    _
  $region19: #{dgauss_forward.1} parent=0 // pred_check_branch
    %369 = sbr.rel (0) target = $region21
  $region20: #{dgauss_forward.1} parent=0 // pred_region
    _
  $region21: #{dgauss_forward.1} parent=0 // pred_fallthru
    _
  // Predicated region
  $region22: #{dgauss_forward.1} parent=0 // pred_check
    _
  $region23: #{dgauss_forward.1} parent=0 // pred_check_branch
    %371 = sbr.rel (0) target = $region25
  $region24: #{dgauss_forward.1} parent=0 // pred_region
    _
  $region25: #{dgauss_forward.1} parent=0 // pred_fallthru
    _
  // Predicated region
  $region26: #{dgauss_forward.1} parent=0 // pred_check
    _
  $region27: #{dgauss_forward.1} parent=0 // pred_check_branch
    %373 = sbr.rel (0) target = $region29
  $region28: #{dgauss_forward.1} parent=0 // pred_region
    _
  $region29: #{dgauss_forward.1} parent=0 // pred_fallthru
    _

</llo_original>
